<compile_context>
chip_gen: v7x
topology: tpu7x:2x2x1
jax: 0.10.0
libtpu: 0.0.40
codegen_flags: <defaults>
</compile_context>

<pallas_src>
import functools

import jax
import jax.numpy as jnp
from jax.experimental import pallas as pl
from jax.experimental.pallas import tpu as pltpu


def _kd_loss_kernel(s_ref, t_ref, o_ref, *, inv_temperature, batch_size, tile_rows):
    """Per-tile partial sum of KL(softmax(teacher/T) || softmax(student/T))."""
    s = s_ref[...].astype(jnp.float32) * inv_temperature
    t = t_ref[...].astype(jnp.float32) * inv_temperature

    # Mask rows beyond the true batch in the last (partial) tile. Zeroed rows
    # contribute exactly 0 to the KL (identical uniform distributions).
    if batch_size % tile_rows != 0:
        row_ids = (jax.lax.broadcasted_iota(jnp.int32, (tile_rows, 1), 0)
                   + pl.program_id(0) * tile_rows)
        valid = row_ids < batch_size
        s = jnp.where(valid, s, 0.0)
        t = jnp.where(valid, t, 0.0)

    # Student log-softmax (numerically stable).
    s_max = jnp.max(s, axis=-1, keepdims=True)
    s_shift = s - s_max
    s_lse = jnp.log(jnp.sum(jnp.exp(s_shift), axis=-1, keepdims=True))

    # Teacher softmax pieces; 1/t_sum is factored OUT of the row reduction so the
    # only divides are per-row (B of them), not per-element (B*C).
    t_max = jnp.max(t, axis=-1, keepdims=True)
    t_shift = t - t_max
    t_exp = jnp.exp(t_shift)
    t_sum = jnp.sum(t_exp, axis=-1, keepdims=True)
    log_t_sum = jnp.log(t_sum)

    # KL row sums:
    #   sum_c p_t * (log_p_t - log_p_s)
    # = [ sum_c t_exp * ((t_shift - s_shift) + (s_lse - log_t_sum)) ] / t_sum
    inner = t_exp * ((t_shift - s_shift) + (s_lse - log_t_sum))
    row_kl = jnp.sum(inner, axis=-1, keepdims=True) / t_sum  # (tile_rows, 1)

    partial = jnp.sum(row_kl)  # scalar f32 partial for this tile

    # Lane-dense (8, 128) output block: full unmasked vector store, partial sum at
    # [0, 0], zeros elsewhere. The wrapper sums everything and divides by B.
    row = jax.lax.broadcasted_iota(jnp.int32, (8, 128), 0)
    lane = jax.lax.broadcasted_iota(jnp.int32, (8, 128), 1)
    o_ref[...] = jnp.where((row + lane) == 0, partial, 0.0)


def _choose_tile_rows(batch, num_classes, itemsize):
    """Row tile: multiple of 8, keeps 2 inputs x 2 pipeline buffers under ~8 MiB."""
    budget_bytes = 8 * 1024 * 1024
    tb = budget_bytes // (4 * num_classes * max(itemsize, 1))
    tb = max(8, min(tb - tb % 8, 1024))
    padded_batch = ((batch + 7) // 8) * 8
    return min(tb, padded_batch)


def knowledge_distillation_loss(y_student, y_teacher, T=1.0):
    """Pallas-backed equivalent of KnowledgeDistillationLoss(T, 'batchmean')."""
    assert y_student.shape == y_teacher.shape and y_student.ndim == 2
    B, C = y_student.shape

    in_itemsize = max(jnp.dtype(y_student.dtype).itemsize,
                      jnp.dtype(y_teacher.dtype).itemsize)
    tb = _choose_tile_rows(B, C, in_itemsize)
    num_tiles = pl.cdiv(B, tb)

    kernel = functools.partial(
        _kd_loss_kernel,
        inv_temperature=1.0 / float(T),
        batch_size=B,
        tile_rows=tb,
    )

    bytes_in = B * C * (jnp.dtype(y_student.dtype).itemsize
                        + jnp.dtype(y_teacher.dtype).itemsize)
    cost = pl.CostEstimate(
        flops=12 * B * C,                 # shifts, products, reductions (non-exp)
        transcendentals=2 * B * C,        # two exps per element dominate
        bytes_accessed=bytes_in + num_tiles * 8 * 128 * 4,
    )

    partials = pl.pallas_call(
        kernel,
        out_shape=jax.ShapeDtypeStruct((num_tiles * 8, 128), jnp.float32),
        grid=(num_tiles,),
        in_specs=[
            pl.BlockSpec((tb, C), lambda i: (i, 0),
                         memory_space=pltpu.MemorySpace.VMEM),
            pl.BlockSpec((tb, C), lambda i: (i, 0),
                         memory_space=pltpu.MemorySpace.VMEM),
        ],
        out_specs=pl.BlockSpec((8, 128), lambda i: (i, 0),
                               memory_space=pltpu.MemorySpace.VMEM),
        compiler_params=pltpu.CompilerParams(
            dimension_semantics=("parallel",),
            vmem_limit_bytes=32 * 1024 * 1024,
        ),
        cost_estimate=cost,
    )(y_student, y_teacher)

    # reduction='batchmean': total KL sum divided by the batch size.
    return jnp.sum(partials) / jnp.float32(B)


def _reference(y_student, y_teacher, T=1.0):
    """Pure-JAX reference mirroring the PyTorch module."""
    log_p_s = jax.nn.log_softmax(y_student / T, axis=-1)
    p_t = jax.nn.softmax(y_teacher / T, axis=-1)
    log_p_t = jax.nn.log_softmax(y_teacher / T, axis=-1)
    kl = p_t * (log_p_t - log_p_s)
    return jnp.sum(kl) / y_student.shape[0]


if __name__ == "__main__":
    key = jax.random.PRNGKey(0)
    k1, k2, k3, k4 = jax.random.split(key, 4)

    # Case 1: f32 logits, batch divisible by the row tile.
    B, C, T = 8, 128, 2.0
    y_student = jax.random.normal(k1, (B, C), dtype=jnp.float32)
    y_teacher = jax.random.normal(k2, (B, C), dtype=jnp.float32)
    loss = jax.block_until_ready(knowledge_distillation_loss(y_student, y_teacher, T=T))
    ref = _reference(y_student, y_teacher, T=T)
    assert jnp.allclose(loss, ref, rtol=1e-5, atol=1e-5), (loss, ref)

    # Case 2: bf16 logits, batch NOT a multiple of 8 (exercises row masking + bf16 path).
    B2, C2, T2 = 12, 256, 4.0
    ys2 = jax.random.normal(k3, (B2, C2), dtype=jnp.bfloat16)
    yt2 = jax.random.normal(k4, (B2, C2), dtype=jnp.bfloat16)
    loss2 = jax.block_until_ready(knowledge_distillation_loss(ys2, yt2, T=T2))
    ref2 = _reference(ys2.astype(jnp.float32), yt2.astype(jnp.float32), T=T2)
    assert jnp.allclose(loss2, ref2, rtol=1e-4, atol=1e-5), (loss2, ref2)

    print("KERNEL_OK")
</pallas_src>

<mosaic_0001>
module attributes {stable_mosaic.version = 11 : i64} {
  func.func @_kd_loss_kernel(%arg0: i32, %arg1: memref<8x128xf32, #tpu.memory_space<vmem>>, %arg2: memref<8x128xf32, #tpu.memory_space<vmem>>, %arg3: memref<8x128xf32, #tpu.memory_space<vmem>>) attributes {dimension_semantics = [#tpu.dimension_semantics<parallel>], iteration_bounds = array<i64: 1>, scalar_prefetch = 0 : i64, scratch_operands = 0 : i64, tpu.core_type = #tpu.core_type<tc>, window_params = [{transform_indices = @transform_0, window_bounds = array<i64: 8, 128>}, {transform_indices = @transform_1, window_bounds = array<i64: 8, 128>}, {transform_indices = @transform_2, window_bounds = array<i64: 8, 128>}]} {
    %c0 = arith.constant 0 : index
    %c0_0 = arith.constant 0 : index
    %0 = vector.load %arg1[%c0, %c0_0] : memref<8x128xf32, #tpu.memory_space<vmem>>, vector<8x128xf32>
    %cst = arith.constant 5.000000e-01 : f32
    %1 = vector.broadcast %cst : f32 to vector<8x128xf32>
    %2 = arith.mulf %0, %1 : vector<8x128xf32>
    %c0_1 = arith.constant 0 : index
    %c0_2 = arith.constant 0 : index
    %3 = vector.load %arg2[%c0_1, %c0_2] : memref<8x128xf32, #tpu.memory_space<vmem>>, vector<8x128xf32>
    %cst_3 = arith.constant 5.000000e-01 : f32
    %4 = vector.broadcast %cst_3 : f32 to vector<8x128xf32>
    %5 = arith.mulf %3, %4 : vector<8x128xf32>
    %cst_4 = arith.constant dense<0xFF800000> : vector<8xf32>
    %6 = vector.multi_reduction <maximumf>, %2, %cst_4 [1] : vector<8x128xf32> to vector<8xf32>
    %7 = vector.shape_cast %6 : vector<8xf32> to vector<8x1xf32>
    %8 = vector.broadcast %7 : vector<8x1xf32> to vector<8x128xf32>
    %9 = arith.subf %2, %8 : vector<8x128xf32>
    %10 = math.exp %9 : vector<8x128xf32>
    %cst_5 = arith.constant dense<0.000000e+00> : vector<8xf32>
    %11 = vector.multi_reduction <add>, %10, %cst_5 [1] : vector<8x128xf32> to vector<8xf32>
    %12 = vector.shape_cast %11 : vector<8xf32> to vector<8x1xf32>
    %13 = math.log %12 : vector<8x1xf32>
    %cst_6 = arith.constant dense<0xFF800000> : vector<8xf32>
    %14 = vector.multi_reduction <maximumf>, %5, %cst_6 [1] : vector<8x128xf32> to vector<8xf32>
    %15 = vector.shape_cast %14 : vector<8xf32> to vector<8x1xf32>
    %16 = vector.broadcast %15 : vector<8x1xf32> to vector<8x128xf32>
    %17 = arith.subf %5, %16 : vector<8x128xf32>
    %18 = math.exp %17 : vector<8x128xf32>
    %cst_7 = arith.constant dense<0.000000e+00> : vector<8xf32>
    %19 = vector.multi_reduction <add>, %18, %cst_7 [1] : vector<8x128xf32> to vector<8xf32>
    %20 = vector.shape_cast %19 : vector<8xf32> to vector<8x1xf32>
    %21 = math.log %20 : vector<8x1xf32>
    %22 = arith.subf %17, %9 : vector<8x128xf32>
    %23 = arith.subf %13, %21 : vector<8x1xf32>
    %24 = vector.broadcast %23 : vector<8x1xf32> to vector<8x128xf32>
    %25 = arith.addf %22, %24 : vector<8x128xf32>
    %26 = arith.mulf %18, %25 : vector<8x128xf32>
    %cst_8 = arith.constant dense<0.000000e+00> : vector<8xf32>
    %27 = vector.multi_reduction <add>, %26, %cst_8 [1] : vector<8x128xf32> to vector<8xf32>
    %28 = vector.shape_cast %27 : vector<8xf32> to vector<8x1xf32>
    %29 = arith.divf %28, %20 : vector<8x1xf32>
    %30 = vector.shape_cast %29 : vector<8x1xf32> to vector<1x8x1xf32>
    %cst_9 = arith.constant dense<0.000000e+00> : vector<1xf32>
    %31 = vector.multi_reduction <add>, %30, %cst_9 [1, 2] : vector<1x8x1xf32> to vector<1xf32>
    %32 = vector.shape_cast %31 : vector<1xf32> to vector<1x1x1xf32>
    %33 = vector.extract %32[0, 0, 0] : f32 from vector<1x1x1xf32>
    %34 = tpu.iota {dimensions = array<i32: 0>} : vector<8x128xi32>
    %35 = tpu.iota {dimensions = array<i32: 1>} : vector<8x128xi32>
    %36 = arith.addi %34, %35 : vector<8x128xi32>
    %c0_i32 = arith.constant 0 : i32
    %37 = vector.broadcast %c0_i32 : i32 to vector<8x128xi32>
    %38 = arith.cmpi eq, %36, %37 : vector<8x128xi32>
    %cst_10 = arith.constant 0.000000e+00 : f32
    %39 = vector.broadcast %33 : f32 to vector<8x128xf32>
    %40 = vector.broadcast %cst_10 : f32 to vector<8x128xf32>
    %41 = arith.select %38, %39, %40 : vector<8x128xi1>, vector<8x128xf32>
    %c0_11 = arith.constant 0 : index
    %c0_12 = arith.constant 0 : index
    %42 = vector.load %arg3[%c0_11, %c0_12] : memref<8x128xf32, #tpu.memory_space<vmem>>, vector<8x128xf32>
    tpu.vector_store %arg3[%c0_11, %c0_12], %41 {strides = array<i32>} : memref<8x128xf32, #tpu.memory_space<vmem>>, vector<8x128xf32>,
    return
  }
  func.func @transform_0(%arg0: i32) -> (i32, i32) {
    %c0_i32 = arith.constant 0 : i32
    %c0_i32_0 = arith.constant 0 : i32
    return %arg0, %c0_i32 : i32, i32
  }
  func.func @transform_1(%arg0: i32) -> (i32, i32) {
    %c0_i32 = arith.constant 0 : i32
    %c0_i32_0 = arith.constant 0 : i32
    return %arg0, %c0_i32 : i32, i32
  }
  func.func @transform_2(%arg0: i32) -> (i32, i32) {
    %c0_i32 = arith.constant 0 : i32
    %c0_i32_0 = arith.constant 0 : i32
    return %arg0, %c0_i32 : i32, i32
  }
}

</mosaic_0001>

<llo_original>
// kernel: tpu_custom_call.1
$region0: #{tpu_custom_call.1}
  #allocation0 [shape = 'u32[]', space=smem, size = 0x4, offset = 0x4, fixed_abs, tag = 'smem constant byte address 0x4 - core index']
  #allocation1 [shape = 'u32[144,128]{1,0:T(1,128)}', space=vmem, size = 0x12000, scoped, tag = 'internal scratch']
  %s0 = inlined_call_operand.hbm [shape: f32[8,128], index: 0, kind: input, shape index: {}]
  %s1 = inlined_call_operand.hbm [shape: f32[8,128], index: 1, kind: input, shape index: {}]
  %s2 = inlined_call_operand.hbm [shape: f32[8,128], index: 2, kind: output, shape index: {}]
  %s3 = sld [smem:[#allocation0]]
  $region26: #{tpu_custom_call.1} parent=0
    _
  %s5 = ssub.s32 1, %s3
  %s6 = scalar_select 0, %s5, %s3
  $region1: #{tpu_custom_call.1} parent=0
    #allocation2 [shape = 'u8[4096]{0}', space=vmem, size = 0x1000, scoped, tag = 'input window, operand 0, single buffered']
    #allocation3 [shape = 's32[1]{0}', space=sflag, size = 0x4, scoped, tag = 'scoped memory for tpu_custom_call.1']
    #allocation4 [shape = 's32[1]{0}', space=sflag, size = 0x4, scoped, tag = 'scoped memory for tpu_custom_call.1']
    #allocation5 [shape = 'u8[4096]{0}', space=vmem, size = 0x1000, scoped, tag = 'input window, operand 1, single buffered']
    #allocation6 [shape = 's32[1]{0}', space=sflag, size = 0x4, scoped, tag = 'scoped memory for tpu_custom_call.1']
    #allocation7 [shape = 'u8[4096]{0}', space=vmem, size = 0x1000, scoped, tag = 'output window, operand 0, single buffered']
    %7 = vsyncpa [#allocation3], 0
    %8 = vsyncpa [#allocation6], 0
    %9 = vsyncpa [#allocation4], 0
    // Predicated region
    $region2: #{tpu_custom_call.1} parent=1 // pred_check
      _
    $region3: #{tpu_custom_call.1} parent=1 // pred_check_branch
      %11 = sbr.rel (0) target = $region5
    $region4: #{tpu_custom_call.1} parent=1 // pred_region
      %s13 = ssub.s32 128, 128
      %14 = vsyncadd [#allocation3], %s13
      %s16 = sshll.u32 [#allocation2], 4
      %s17 = int_to_ptr.vmem [resolvable:$true] %s16
      %19 = dma.hbm_to_vmem [thread:$0]  %s0, 128, %s17, [#allocation3]
    $region5: #{tpu_custom_call.1} parent=1 // pred_fallthru
      _
    // Predicated region
    $region6: #{tpu_custom_call.1} parent=1 // pred_check
      _
    $region7: #{tpu_custom_call.1} parent=1 // pred_check_branch
      %21 = sbr.rel (0) target = $region9
    $region8: #{tpu_custom_call.1} parent=1 // pred_region
      %s23 = ssub.s32 128, 128
      %24 = vsyncadd [#allocation6], %s23
      %s26 = sshll.u32 [#allocation5], 4
      %s27 = int_to_ptr.vmem [resolvable:$true] %s26
      %29 = dma.hbm_to_vmem [thread:$0]  %s1, 128, %s27, [#allocation6]
    $region9: #{tpu_custom_call.1} parent=1 // pred_fallthru
      _
    // Predicated region
    $region10: #{tpu_custom_call.1} parent=1 // pred_check
      _
    $region11: #{tpu_custom_call.1} parent=1 // pred_check_branch
      %31 = sbr.rel (0) target = $region13
    $region12: #{tpu_custom_call.1} parent=1 // pred_region
      %32 = dma.done [#allocation3], 128
    $region13: #{tpu_custom_call.1} parent=1 // pred_fallthru
      _
    // Predicated region
    $region14: #{tpu_custom_call.1} parent=1 // pred_check
      _
    $region15: #{tpu_custom_call.1} parent=1 // pred_check_branch
      %34 = sbr.rel (0) target = $region17
    $region16: #{tpu_custom_call.1} parent=1 // pred_region
      %35 = dma.done [#allocation6], 128
    $region17: #{tpu_custom_call.1} parent=1 // pred_fallthru
      _
    %v36 = vld [vmem:[#allocation2] sm:$0xff]
    %v37 = vmul.f32 %v36, 0.5
    %v38 = vld [vmem:[#allocation5] sm:$0xff]
    %v39 = vmul.f32 %v38, 0.5
    %40 = vmax.xlane.f32.xlu0 %v37
    %v41 = vpop.xlane.xlu0 %40
    %v42 = vsub.f32 %v37, %v41
    %v43 = vmul.f32 %v42, 1.442695
    %v44 = vpow.pop %v43
    %45 = vadd.xlane.f32.xlu0 %v44
    %v46 = vpop.xlane.xlu0 %45
    %v47 = vlog2.pop %v46
    %v48 = vmul.f32 %v47, 0.6931472
    %49 = vmax.xlane.f32.xlu0 %v39
    %v50 = vpop.xlane.xlu0 %49
    %v51 = vsub.f32 %v39, %v50
    %v52 = vmul.f32 %v51, 1.442695
    %v53 = vpow.pop %v52
    %54 = vadd.xlane.f32.xlu0 %v53
    %v55 = vpop.xlane.xlu0 %54
    %v56 = vlog2.pop %v55
    %v57 = vmul.f32 %v56, 0.6931472
    %v58 = vsub.f32 %v51, %v42
    %v59 = vsub.f32 %v48, %v57
    %v60 = vadd.f32 %v58, %v59
    %v61 = vmul.f32 %v53, %v60
    %62 = vadd.xlane.f32.xlu0 %v61
    %v63 = vpop.xlane.xlu0 %62
    %v64 = vrcp.pop %v55
    %v65 = vmul.f32 %v63, %v64
    %vm66 = vcmask 7168
    %v67 = vsel %vm66, %v65, 0.0
    %68 = vadd.xlane.f32.xlu0 %v67
    %v69 = vpop.xlane.xlu0 %68
    %v70 = vrot.slane %v69, 4
    %v71 = vadd.f32 %v69, %v70
    %v72 = vrot.slane %v71, 2
    %v73 = vadd.f32 %v71, %v72
    %v74 = vrot.slane %v73, 1
    %v75 = vadd.f32 %v73, %v74
    %s76 = vtos %v75
    %v77 = vlaneseq
    %v78 = vshrl.u32 %v77, 7
    %v79 = vlaneseq
    %v80 = vand.u32 %v79, 127
    %v81 = vadd.s32 %v78, %v80
    %vm82 = vcmp.eq.s32.totalorder %v81, 0
    %v83 = vstv %s76
    %v84 = vsel %vm82, %v83, 0.0
    %85 = vst [vmem:[#allocation7] sm:$0xff] %v84
    // Predicated region
    $region18: #{tpu_custom_call.1} parent=1 // pred_check
      _
    $region19: #{tpu_custom_call.1} parent=1 // pred_check_branch
      %87 = sbr.rel (0) target = $region21
    $region20: #{tpu_custom_call.1} parent=1 // pred_region
      %s89 = ssub.s32 128, 128
      %90 = vsyncadd [#allocation4], %s89
      %s92 = sshll.u32 [#allocation7], 4
      %s93 = int_to_ptr.vmem [resolvable:$true] %s92
      %95 = dma.vmem_to_hbm [thread:$0]  %s93, 128, %s2, [#allocation4]
    $region21: #{tpu_custom_call.1} parent=1 // pred_fallthru
      _
    // Predicated region
    $region22: #{tpu_custom_call.1} parent=1 // pred_check
      _
    $region23: #{tpu_custom_call.1} parent=1 // pred_check_branch
      %97 = sbr.rel (0) target = $region25
    $region24: #{tpu_custom_call.1} parent=1 // pred_region
      %98 = dma.done [#allocation4], 128
    $region25: #{tpu_custom_call.1} parent=1 // pred_fallthru
      _
    %99 = vsyncpa [#allocation3], 1
    %100 = vsyncpa [#allocation6], 1
    %101 = vsyncpa [#allocation4], 1

</llo_original>
